<compile_context>
chip_gen: v6e
topology: v6e:2x2x1
jax: 0.10.0
libtpu: 0.0.40
codegen_flags: <defaults>
</compile_context>

<pallas_src>
import jax
import jax.numpy as jnp
from jax.experimental import pallas as pl
from jax.experimental.pallas import tpu as pltpu

# ---- "args" (two_hyper_layers=False  =>  state_dims must equal obs_input_dims) ----
B, A, T = 2, 4, 5          # batch, n_agents, episode length
OBS_DIMS = 16              # args.obs_input_dims
STATE_DIMS = 16            # args.state_dims
Z_DIMS = 32                # args.z_dims
VAR_FLOOR = 0.002          # args.var_floor
N = B * A

assert OBS_DIMS == STATE_DIMS, "two_hyper_layers=False feeds state into Linear(obs_input_dims, ...)"
assert Z_DIMS & (Z_DIMS - 1) == 0, "in-kernel M synthesis uses a power-of-two bitmask"

_EZ = OBS_DIMS * Z_DIMS


def _coach_kernel(obs_ref, state_ref,
                  ww1_ref, bw1_ref, wb1_ref, bb1_ref,
                  wh1_ref, bh1_ref, wh2_ref, bh2_ref,
                  out_ref):
    f32 = jnp.float32
    bf16 = jnp.bfloat16
    obs = obs_ref[...]        # (TM, E)  bf16
    state = state_ref[...]    # (TM, S)  bf16

    # Hypernetwork: per-row weight (E, Z) kept flattened as E*Z lane columns.
    # bf16 operands, f32 accumulation, f32 bias add.
    w1_all = jnp.dot(state, ww1_ref[...], preferred_element_type=f32) + bw1_ref[...]   # (TM, E*Z)
    b1_all = jnp.dot(state, wb1_ref[...], preferred_element_type=f32) + bb1_ref[...]   # (TM, Z)

    # Synthesize the fixed 0/1 glue matrices in-kernel (VPU iota) instead of DMA:
    #   R[k, m] = 1  iff  m in [k*Z, (k+1)*Z)            (E, E*Z)   obs expansion
    #   M[m, j] = 1  iff  m mod Z == j                   (E*Z, Z)   strided reduction
    k_r = jax.lax.broadcasted_iota(jnp.int32, (OBS_DIMS, _EZ), 0)
    m_r = jax.lax.broadcasted_iota(jnp.int32, (OBS_DIMS, _EZ), 1)
    R = ((m_r >= k_r * Z_DIMS) & (m_r < k_r * Z_DIMS + Z_DIMS)).astype(bf16)
    m_m = jax.lax.broadcasted_iota(jnp.int32, (_EZ, Z_DIMS), 0)
    j_m = jax.lax.broadcasted_iota(jnp.int32, (_EZ, Z_DIMS), 1)
    M = ((m_m & (Z_DIMS - 1)) == j_m).astype(bf16)

    # Batched per-row matvec obs[n] @ w1[n]:
    #   obs_exp[n, k*Z+j] = obs[n, k]
    #   z_pre[n, j]       = sum_k obs[n, k] * w1_all[n, k*Z+j]
    obs_exp = jnp.dot(obs, R, preferred_element_type=f32)                   # (TM, E*Z)
    prod = (obs_exp * w1_all).astype(bf16)
    z_pre = jnp.dot(prod, M, preferred_element_type=f32) + b1_all           # (TM, Z)

    # F.elu (alpha = 1); exp(min(., 0)) keeps the unselected branch finite.
    z_h = jnp.where(z_pre > 0, z_pre, jnp.exp(jnp.minimum(z_pre, 0.0)) - 1.0)

    # Fused mu | sigma heads: Linear -> LeakyReLU(0.01) -> block-diag Linear.
    h = jnp.dot(z_h.astype(bf16), wh1_ref[...], preferred_element_type=f32) + bh1_ref[...]   # (TM, 2Z)
    h = jnp.where(h > 0, h, 0.01 * h)
    ms = jnp.dot(h.astype(bf16), wh2_ref[...], preferred_element_type=f32) + bh2_ref[...]    # (TM, 2Z) = [mu | sig]

    # Right half: std = sqrt(clamp(exp(sig), var_floor)); left half: mu (pass-through).
    lane = jax.lax.broadcasted_iota(jnp.int32, ms.shape, 1)
    std_all = jnp.sqrt(jnp.maximum(jnp.exp(jnp.minimum(ms, 80.0)), VAR_FLOOR))
    out_ref[...] = jnp.where(lane < Z_DIMS, ms, std_all)


def _round_up(x, m):
    return (x + m - 1) // m * m


def _coach_rows(p, obs_rows, state_rows):
    """Run the fused kernel on an arbitrary number of rows (padded to a tile)."""
    n = obs_rows.shape[0]
    tm = min(128, _round_up(n, 8))          # row tile; grid degenerates to 1 step for small n
    n_pad = _round_up(n, tm)

    obs_b = obs_rows.astype(jnp.bfloat16)
    st_b = state_rows.astype(jnp.bfloat16)
    if n_pad != n:
        pad = n_pad - n
        obs_b = jnp.concatenate([obs_b, jnp.zeros((pad, obs_b.shape[1]), obs_b.dtype)], axis=0)
        st_b = jnp.concatenate([st_b, jnp.zeros((pad, st_b.shape[1]), st_b.dtype)], axis=0)

    out = pl.pallas_call(
        _coach_kernel,
        out_shape=jax.ShapeDtypeStruct((n_pad, 2 * Z_DIMS), jnp.float32),
        grid=(n_pad // tm,),
        in_specs=[
            pl.BlockSpec((tm, OBS_DIMS), lambda i: (i, 0)),        # obs rows
            pl.BlockSpec((tm, STATE_DIMS), lambda i: (i, 0)),      # state rows
            pl.BlockSpec((STATE_DIMS, _EZ), lambda i: (0, 0)),     # ww1
            pl.BlockSpec((1, _EZ), lambda i: (0, 0)),              # bw1
            pl.BlockSpec((STATE_DIMS, Z_DIMS), lambda i: (0, 0)),  # wb1
            pl.BlockSpec((1, Z_DIMS), lambda i: (0, 0)),           # bb1
            pl.BlockSpec((Z_DIMS, 2 * Z_DIMS), lambda i: (0, 0)),  # [wm1 | ws1]
            pl.BlockSpec((1, 2 * Z_DIMS), lambda i: (0, 0)),       # [bm1 | bs1]
            pl.BlockSpec((2 * Z_DIMS, 2 * Z_DIMS), lambda i: (0, 0)),  # blockdiag(wm2, ws2)
            pl.BlockSpec((1, 2 * Z_DIMS), lambda i: (0, 0)),       # [bm2 | bs2]
        ],
        out_specs=pl.BlockSpec((tm, 2 * Z_DIMS), lambda i: (i, 0)),
        compiler_params=pltpu.CompilerParams(dimension_semantics=("parallel",)),
    )(obs_b, st_b,
      p['ww1'], p['bw1'], p['wb1'], p['bb1'],
      p['wh1'], p['bh1'], p['wh2'], p['bh2'])
    return out[:n]


def init_params(key):
    """Deterministic synthetic parameters (PyTorch nn.Linear-style uniform init), f32."""
    def linear(k, fan_in, fan_out):
        kw, kb = jax.random.split(k)
        bound = 1.0 / (fan_in ** 0.5)
        w = jax.random.uniform(kw, (fan_in, fan_out), jnp.float32, -bound, bound)
        b = jax.random.uniform(kb, (1, fan_out), jnp.float32, -bound, bound)
        return w, b

    keys = jax.random.split(key, 6)
    return {
        'w1':  linear(keys[0], OBS_DIMS, OBS_DIMS * Z_DIMS),   # two_hyper_layers=False branch
        'b1':  linear(keys[1], STATE_DIMS, Z_DIMS),
        'mu1': linear(keys[2], Z_DIMS, Z_DIMS),
        'mu2': linear(keys[3], Z_DIMS, Z_DIMS),
        'sig1': linear(keys[4], Z_DIMS, Z_DIMS),
        'sig2': linear(keys[5], Z_DIMS, Z_DIMS),
    }


def pack_params(params):
    """One-time packing: bf16 MXU weights, fused mu/sigma heads, f32 biases."""
    bf = jnp.bfloat16
    z = Z_DIMS
    wm1, bm1 = params['mu1']
    ws1, bs1 = params['sig1']
    wm2, bm2 = params['mu2']
    ws2, bs2 = params['sig2']
    wh1 = jnp.concatenate([wm1, ws1], axis=1)                  # (Z, 2Z)
    bh1 = jnp.concatenate([bm1, bs1], axis=1)                  # (1, 2Z)
    wh2 = (jnp.zeros((2 * z, 2 * z), jnp.float32)
           .at[:z, :z].set(wm2).at[z:, z:].set(ws2))           # block-diag (2Z, 2Z)
    bh2 = jnp.concatenate([bm2, bs2], axis=1)                  # (1, 2Z)
    return {
        'ww1': params['w1'][0].astype(bf), 'bw1': params['w1'][1],
        'wb1': params['b1'][0].astype(bf), 'bb1': params['b1'][1],
        'wh1': wh1.astype(bf), 'bh1': bh1,
        'wh2': wh2.astype(bf), 'bh2': bh2,
    }


@jax.jit
def dec_coach_net2_forward(packed, ep_state, obs, t):
    """Module-semantics forward: ep_state (B,T,S), obs (B,A,E), scalar t."""
    b, a, e = obs.shape
    state_t = jax.lax.dynamic_index_in_dim(ep_state, t, axis=1, keepdims=False)  # (B, S)
    state_rep = jnp.repeat(state_t, a, axis=0)                                   # (B*A, S)
    obs_flat = obs.reshape(b * a, e)                                             # (B*A, E)
    out = _coach_rows(packed, obs_flat, state_rep)                               # (B*A, 2Z)
    mu, std = out[:, :Z_DIMS], out[:, Z_DIMS:]
    # TODO(synk): torch.distributions.Normal has no Pallas/array equivalent; return the
    # distribution parameters (mu, scale). dist_wog (no-grad clone) is numerically identical.
    return (mu, std), (mu, std)


@jax.jit
def dec_coach_net2_forward_all_t(packed, ep_state, obs_all):
    """Batched path: fold the time axis into rows (N = B*T*A) to amortize launch/DMA."""
    b, tt, a, e = obs_all.shape
    state_rep = jnp.repeat(ep_state.reshape(b * tt, -1), a, axis=0)   # (B*T*A, S)
    obs_flat = obs_all.reshape(b * tt * a, e)                         # (B*T*A, E)
    out = _coach_rows(packed, obs_flat, state_rep)
    mu = out[:, :Z_DIMS].reshape(b, tt, a, Z_DIMS)
    std = out[:, Z_DIMS:].reshape(b, tt, a, Z_DIMS)
    return mu, std


def _reference_forward(params, ep_state, obs, t):
    """Pure-JAX f32 reference of the PyTorch module."""
    b, a, e = obs.shape
    state_rep = jnp.repeat(ep_state[:, t, :][:, None, :], a, axis=1).reshape(b * a, -1)
    obs3 = obs.reshape(b * a, 1, e)
    w1 = (state_rep @ params['w1'][0] + params['w1'][1]).reshape(b * a, e, Z_DIMS)
    b1 = (state_rep @ params['b1'][0] + params['b1'][1]).reshape(b * a, 1, Z_DIMS)
    z = jax.nn.elu(jnp.matmul(obs3, w1) + b1).squeeze()
    h_mu = jax.nn.leaky_relu(z @ params['mu1'][0] + params['mu1'][1], 0.01)
    mu = h_mu @ params['mu2'][0] + params['mu2'][1]
    h_s = jax.nn.leaky_relu(z @ params['sig1'][0] + params['sig1'][1], 0.01)
    sig = h_s @ params['sig2'][0] + params['sig2'][1]
    var = jnp.maximum(jnp.exp(sig), VAR_FLOOR)
    return mu, jnp.sqrt(var)


if __name__ == "__main__":
    key = jax.random.PRNGKey(0)
    k_p, k_s, k_o = jax.random.split(key, 3)
    params = init_params(k_p)
    packed = pack_params(params)
    ep_state = jax.random.normal(k_s, (B, T, STATE_DIMS), jnp.float32)      # ep_batch['state']
    obs_all = jax.random.normal(k_o, (B, T, A, OBS_DIMS), jnp.float32)      # per-step observations
    t = 2
    obs = obs_all[:, t]                                                     # (B, A, E)

    # Tolerances account for bf16 MXU operands (f32 accumulation, f32 elementwise).
    RTOL, ATOL = 5e-2, 3e-2

    # 1) Module-semantics single-step forward.
    (mu, std), (mu_wog, std_wog) = dec_coach_net2_forward(packed, ep_state, obs, t)
    jax.block_until_ready((mu, std, mu_wog, std_wog))
    mu_ref, std_ref = _reference_forward(params, ep_state, obs, t)
    assert mu.shape == (N, Z_DIMS) and std.shape == (N, Z_DIMS)
    assert jnp.allclose(mu, mu_ref, rtol=RTOL, atol=ATOL)
    assert jnp.allclose(std, std_ref, rtol=RTOL, atol=ATOL)

    # 2) Batched-over-time path: whole episode folded into the row axis (one kernel call).
    mu_b, std_b = dec_coach_net2_forward_all_t(packed, ep_state, obs_all)
    jax.block_until_ready((mu_b, std_b))
    for tt in range(T):
        mr, sr = _reference_forward(params, ep_state, obs_all[:, tt], tt)
        assert jnp.allclose(mu_b[:, tt].reshape(N, Z_DIMS), mr, rtol=RTOL, atol=ATOL)
        assert jnp.allclose(std_b[:, tt].reshape(N, Z_DIMS), sr, rtol=RTOL, atol=ATOL)

    print("KERNEL_OK")
</pallas_src>

<mosaic_0001>
module attributes {stable_mosaic.version = 11 : i64} {
  func.func @_coach_kernel(%arg0: i32, %arg1: memref<8x16xbf16, #tpu.memory_space<vmem>>, %arg2: memref<8x16xbf16, #tpu.memory_space<vmem>>, %arg3: memref<16x512xbf16, #tpu.memory_space<vmem>>, %arg4: memref<1x512xf32, #tpu.memory_space<vmem>>, %arg5: memref<16x32xbf16, #tpu.memory_space<vmem>>, %arg6: memref<1x32xf32, #tpu.memory_space<vmem>>, %arg7: memref<32x64xbf16, #tpu.memory_space<vmem>>, %arg8: memref<1x64xf32, #tpu.memory_space<vmem>>, %arg9: memref<64x64xbf16, #tpu.memory_space<vmem>>, %arg10: memref<1x64xf32, #tpu.memory_space<vmem>>, %arg11: memref<8x64xf32, #tpu.memory_space<vmem>>) attributes {dimension_semantics = [#tpu.dimension_semantics<parallel>], iteration_bounds = array<i64: 1>, scalar_prefetch = 0 : i64, scratch_operands = 0 : i64, tpu.core_type = #tpu.core_type<tc>, window_params = [{transform_indices = @transform_0, window_bounds = array<i64: 8, 16>}, {transform_indices = @transform_1, window_bounds = array<i64: 8, 16>}, {pipeline_mode = #tpu.pipeline_mode<synchronous>, transform_indices = @transform_2, window_bounds = array<i64: 16, 512>}, {pipeline_mode = #tpu.pipeline_mode<synchronous>, transform_indices = @transform_3, window_bounds = array<i64: 1, 512>}, {pipeline_mode = #tpu.pipeline_mode<synchronous>, transform_indices = @transform_4, window_bounds = array<i64: 16, 32>}, {pipeline_mode = #tpu.pipeline_mode<synchronous>, transform_indices = @transform_5, window_bounds = array<i64: 1, 32>}, {pipeline_mode = #tpu.pipeline_mode<synchronous>, transform_indices = @transform_6, window_bounds = array<i64: 32, 64>}, {pipeline_mode = #tpu.pipeline_mode<synchronous>, transform_indices = @transform_7, window_bounds = array<i64: 1, 64>}, {pipeline_mode = #tpu.pipeline_mode<synchronous>, transform_indices = @transform_8, window_bounds = array<i64: 64, 64>}, {pipeline_mode = #tpu.pipeline_mode<synchronous>, transform_indices = @transform_9, window_bounds = array<i64: 1, 64>}, {transform_indices = @transform_10, window_bounds = array<i64: 8, 64>}]} {
    %c0 = arith.constant 0 : index
    %c0_0 = arith.constant 0 : index
    %0 = vector.load %arg1[%c0, %c0_0] : memref<8x16xbf16, #tpu.memory_space<vmem>>, vector<8x16xbf16>
    %c0_1 = arith.constant 0 : index
    %c0_2 = arith.constant 0 : index
    %1 = vector.load %arg2[%c0_1, %c0_2] : memref<8x16xbf16, #tpu.memory_space<vmem>>, vector<8x16xbf16>
    %c0_3 = arith.constant 0 : index
    %c0_4 = arith.constant 0 : index
    %2 = vector.load %arg3[%c0_3, %c0_4] : memref<16x512xbf16, #tpu.memory_space<vmem>>, vector<16x512xbf16>
    %cst = arith.constant dense<0.000000e+00> : vector<8x512xf32>
    %3 = tpu.matmul %1, %2, %cst {dimension_numbers = #tpu.dot_dimension_numbers<[1], [0], [0], [1], [0, 0, 1, 1], [], []>} : vector<8x16xbf16>, vector<16x512xbf16>, vector<8x512xf32> -> vector<8x512xf32>
    %c0_5 = arith.constant 0 : index
    %c0_6 = arith.constant 0 : index
    %4 = vector.load %arg4[%c0_5, %c0_6] : memref<1x512xf32, #tpu.memory_space<vmem>>, vector<1x512xf32>
    %5 = vector.broadcast %4 : vector<1x512xf32> to vector<8x512xf32>
    %6 = arith.addf %3, %5 : vector<8x512xf32>
    %c0_7 = arith.constant 0 : index
    %c0_8 = arith.constant 0 : index
    %7 = vector.load %arg5[%c0_7, %c0_8] : memref<16x32xbf16, #tpu.memory_space<vmem>>, vector<16x32xbf16>
    %cst_9 = arith.constant dense<0.000000e+00> : vector<8x32xf32>
    %8 = tpu.matmul %1, %7, %cst_9 {dimension_numbers = #tpu.dot_dimension_numbers<[1], [0], [0], [1], [0, 0, 1, 1], [], []>} : vector<8x16xbf16>, vector<16x32xbf16>, vector<8x32xf32> -> vector<8x32xf32>
    %c0_10 = arith.constant 0 : index
    %c0_11 = arith.constant 0 : index
    %9 = vector.load %arg6[%c0_10, %c0_11] : memref<1x32xf32, #tpu.memory_space<vmem>>, vector<1x32xf32>
    %10 = vector.broadcast %9 : vector<1x32xf32> to vector<8x32xf32>
    %11 = arith.addf %8, %10 : vector<8x32xf32>
    %12 = tpu.iota {dimensions = array<i32: 0>} : vector<16x512xi32>
    %13 = tpu.iota {dimensions = array<i32: 1>} : vector<16x512xi32>
    %c32_i32 = arith.constant 32 : i32
    %14 = vector.broadcast %c32_i32 : i32 to vector<16x512xi32>
    %15 = arith.muli %12, %14 : vector<16x512xi32>
    %16 = arith.cmpi sge, %13, %15 : vector<16x512xi32>
    %c32_i32_12 = arith.constant 32 : i32
    %17 = vector.broadcast %c32_i32_12 : i32 to vector<16x512xi32>
    %18 = arith.muli %12, %17 : vector<16x512xi32>
    %c32_i32_13 = arith.constant 32 : i32
    %19 = vector.broadcast %c32_i32_13 : i32 to vector<16x512xi32>
    %20 = arith.addi %18, %19 : vector<16x512xi32>
    %21 = arith.cmpi slt, %13, %20 : vector<16x512xi32>
    %22 = arith.andi %16, %21 : vector<16x512xi1>
    %23 = arith.extui %22 : vector<16x512xi1> to vector<16x512xi32>
    %24 = arith.sitofp %23 : vector<16x512xi32> to vector<16x512xf32>
    %25 = arith.truncf %24 : vector<16x512xf32> to vector<16x512xbf16>
    %26 = tpu.iota {dimensions = array<i32: 0>} : vector<512x32xi32>
    %27 = tpu.iota {dimensions = array<i32: 1>} : vector<512x32xi32>
    %c31_i32 = arith.constant 31 : i32
    %28 = vector.broadcast %c31_i32 : i32 to vector<512x32xi32>
    %29 = arith.andi %26, %28 : vector<512x32xi32>
    %30 = arith.cmpi eq, %29, %27 : vector<512x32xi32>
    %31 = arith.extui %30 : vector<512x32xi1> to vector<512x32xi32>
    %32 = arith.sitofp %31 : vector<512x32xi32> to vector<512x32xf32>
    %33 = arith.truncf %32 : vector<512x32xf32> to vector<512x32xbf16>
    %cst_14 = arith.constant dense<0.000000e+00> : vector<8x512xf32>
    %34 = tpu.matmul %0, %25, %cst_14 {dimension_numbers = #tpu.dot_dimension_numbers<[1], [0], [0], [1], [0, 0, 1, 1], [], []>} : vector<8x16xbf16>, vector<16x512xbf16>, vector<8x512xf32> -> vector<8x512xf32>
    %35 = arith.mulf %34, %6 : vector<8x512xf32>
    %36 = arith.truncf %35 : vector<8x512xf32> to vector<8x512xbf16>
    %cst_15 = arith.constant dense<0.000000e+00> : vector<8x32xf32>
    %37 = tpu.matmul %36, %33, %cst_15 {dimension_numbers = #tpu.dot_dimension_numbers<[1], [0], [0], [1], [0, 0, 1, 1], [], []>} : vector<8x512xbf16>, vector<512x32xbf16>, vector<8x32xf32> -> vector<8x32xf32>
    %38 = arith.addf %37, %11 : vector<8x32xf32>
    %cst_16 = arith.constant 0.000000e+00 : f32
    %39 = vector.broadcast %cst_16 : f32 to vector<8x32xf32>
    %40 = arith.cmpf ogt, %38, %39 : vector<8x32xf32>
    %cst_17 = arith.constant 0.000000e+00 : f32
    %41 = vector.broadcast %cst_17 : f32 to vector<8x32xf32>
    %42 = arith.minimumf %38, %41 : vector<8x32xf32>
    %43 = math.exp %42 : vector<8x32xf32>
    %cst_18 = arith.constant 1.000000e+00 : f32
    %44 = vector.broadcast %cst_18 : f32 to vector<8x32xf32>
    %45 = arith.subf %43, %44 : vector<8x32xf32>
    %46 = arith.select %40, %38, %45 : vector<8x32xi1>, vector<8x32xf32>
    %47 = arith.truncf %46 : vector<8x32xf32> to vector<8x32xbf16>
    %c0_19 = arith.constant 0 : index
    %c0_20 = arith.constant 0 : index
    %48 = vector.load %arg7[%c0_19, %c0_20] : memref<32x64xbf16, #tpu.memory_space<vmem>>, vector<32x64xbf16>
    %cst_21 = arith.constant dense<0.000000e+00> : vector<8x64xf32>
    %49 = tpu.matmul %47, %48, %cst_21 {dimension_numbers = #tpu.dot_dimension_numbers<[1], [0], [0], [1], [0, 0, 1, 1], [], []>} : vector<8x32xbf16>, vector<32x64xbf16>, vector<8x64xf32> -> vector<8x64xf32>
    %c0_22 = arith.constant 0 : index
    %c0_23 = arith.constant 0 : index
    %50 = vector.load %arg8[%c0_22, %c0_23] : memref<1x64xf32, #tpu.memory_space<vmem>>, vector<1x64xf32>
    %51 = vector.broadcast %50 : vector<1x64xf32> to vector<8x64xf32>
    %52 = arith.addf %49, %51 : vector<8x64xf32>
    %cst_24 = arith.constant 0.000000e+00 : f32
    %53 = vector.broadcast %cst_24 : f32 to vector<8x64xf32>
    %54 = arith.cmpf ogt, %52, %53 : vector<8x64xf32>
    %cst_25 = arith.constant 0.00999999977 : f32
    %55 = vector.broadcast %cst_25 : f32 to vector<8x64xf32>
    %56 = arith.mulf %55, %52 : vector<8x64xf32>
    %57 = arith.select %54, %52, %56 : vector<8x64xi1>, vector<8x64xf32>
    %58 = arith.truncf %57 : vector<8x64xf32> to vector<8x64xbf16>
    %c0_26 = arith.constant 0 : index
    %c0_27 = arith.constant 0 : index
    %59 = vector.load %arg9[%c0_26, %c0_27] : memref<64x64xbf16, #tpu.memory_space<vmem>>, vector<64x64xbf16>
    %cst_28 = arith.constant dense<0.000000e+00> : vector<8x64xf32>
    %60 = tpu.matmul %58, %59, %cst_28 {dimension_numbers = #tpu.dot_dimension_numbers<[1], [0], [0], [1], [0, 0, 1, 1], [], []>} : vector<8x64xbf16>, vector<64x64xbf16>, vector<8x64xf32> -> vector<8x64xf32>
    %c0_29 = arith.constant 0 : index
    %c0_30 = arith.constant 0 : index
    %61 = vector.load %arg10[%c0_29, %c0_30] : memref<1x64xf32, #tpu.memory_space<vmem>>, vector<1x64xf32>
    %62 = vector.broadcast %61 : vector<1x64xf32> to vector<8x64xf32>
    %63 = arith.addf %60, %62 : vector<8x64xf32>
    %64 = tpu.iota {dimensions = array<i32: 1>} : vector<8x64xi32>
    %cst_31 = arith.constant 8.000000e+01 : f32
    %65 = vector.broadcast %cst_31 : f32 to vector<8x64xf32>
    %66 = arith.minimumf %63, %65 : vector<8x64xf32>
    %67 = math.exp %66 : vector<8x64xf32>
    %cst_32 = arith.constant 2.000000e-03 : f32
    %68 = vector.broadcast %cst_32 : f32 to vector<8x64xf32>
    %69 = arith.maximumf %67, %68 : vector<8x64xf32>
    %70 = math.sqrt %69 : vector<8x64xf32>
    %c32_i32_33 = arith.constant 32 : i32
    %71 = vector.broadcast %c32_i32_33 : i32 to vector<8x64xi32>
    %72 = arith.cmpi slt, %64, %71 : vector<8x64xi32>
    %73 = arith.select %72, %63, %70 : vector<8x64xi1>, vector<8x64xf32>
    %c0_34 = arith.constant 0 : index
    %c0_35 = arith.constant 0 : index
    %74 = vector.load %arg11[%c0_34, %c0_35] : memref<8x64xf32, #tpu.memory_space<vmem>>, vector<8x64xf32>
    tpu.vector_store %arg11[%c0_34, %c0_35], %73 {strides = array<i32>} : memref<8x64xf32, #tpu.memory_space<vmem>>, vector<8x64xf32>,
    return
  }
  func.func @transform_0(%arg0: i32) -> (i32, i32) {
    %c0_i32 = arith.constant 0 : i32
    %c0_i32_0 = arith.constant 0 : i32
    return %arg0, %c0_i32 : i32, i32
  }
  func.func @transform_1(%arg0: i32) -> (i32, i32) {
    %c0_i32 = arith.constant 0 : i32
    %c0_i32_0 = arith.constant 0 : i32
    return %arg0, %c0_i32 : i32, i32
  }
  func.func @transform_2(%arg0: i32) -> (i32, i32) {
    %c0_i32 = arith.constant 0 : i32
    %c0_i32_0 = arith.constant 0 : i32
    %c0_i32_1 = arith.constant 0 : i32
    return %c0_i32, %c0_i32_0 : i32, i32
  }
  func.func @transform_3(%arg0: i32) -> (i32, i32) {
    %c0_i32 = arith.constant 0 : i32
    %c0_i32_0 = arith.constant 0 : i32
    %c0_i32_1 = arith.constant 0 : i32
    return %c0_i32, %c0_i32_0 : i32, i32
  }
  func.func @transform_4(%arg0: i32) -> (i32, i32) {
    %c0_i32 = arith.constant 0 : i32
    %c0_i32_0 = arith.constant 0 : i32
    %c0_i32_1 = arith.constant 0 : i32
    return %c0_i32, %c0_i32_0 : i32, i32
  }
  func.func @transform_5(%arg0: i32) -> (i32, i32) {
    %c0_i32 = arith.constant 0 : i32
    %c0_i32_0 = arith.constant 0 : i32
    %c0_i32_1 = arith.constant 0 : i32
    return %c0_i32, %c0_i32_0 : i32, i32
  }
  func.func @transform_6(%arg0: i32) -> (i32, i32) {
    %c0_i32 = arith.constant 0 : i32
    %c0_i32_0 = arith.constant 0 : i32
    %c0_i32_1 = arith.constant 0 : i32
    return %c0_i32, %c0_i32_0 : i32, i32
  }
  func.func @transform_7(%arg0: i32) -> (i32, i32) {
    %c0_i32 = arith.constant 0 : i32
    %c0_i32_0 = arith.constant 0 : i32
    %c0_i32_1 = arith.constant 0 : i32
    return %c0_i32, %c0_i32_0 : i32, i32
  }
  func.func @transform_8(%arg0: i32) -> (i32, i32) {
    %c0_i32 = arith.constant 0 : i32
    %c0_i32_0 = arith.constant 0 : i32
    %c0_i32_1 = arith.constant 0 : i32
    return %c0_i32, %c0_i32_0 : i32, i32
  }
  func.func @transform_9(%arg0: i32) -> (i32, i32) {
    %c0_i32 = arith.constant 0 : i32
    %c0_i32_0 = arith.constant 0 : i32
    %c0_i32_1 = arith.constant 0 : i32
    return %c0_i32, %c0_i32_0 : i32, i32
  }
  func.func @transform_10(%arg0: i32) -> (i32, i32) {
    %c0_i32 = arith.constant 0 : i32
    %c0_i32_0 = arith.constant 0 : i32
    return %arg0, %c0_i32 : i32, i32
  }
}

</mosaic_0001>

<llo_original>
// kernel: dec_coach_net2_forward.1
$region0: #{dec_coach_net2_forward.1}
  #allocation0 [shape = 'u32[]', space=smem, size = 0x4, offset = 0x4, fixed_abs, tag = 'smem constant byte address 0x4 - core index']
  #allocation1 [shape = 'u32[144,128]{1,0:T(1,128)}', space=vmem, size = 0x12000, scoped, tag = 'internal scratch']
  %s0 = inlined_call_operand.vmem [shape: bf16[8,16], index: 0, kind: input, shape index: {}]
  %s1 = inlined_call_operand.vmem [shape: bf16[8,16], index: 1, kind: input, shape index: {}]
  %s2 = inlined_call_operand.vmem [shape: bf16[16,512], index: 2, kind: input, shape index: {}]
  %s3 = inlined_call_operand.hbm [shape: f32[1,512], index: 3, kind: input, shape index: {}]
  %s4 = inlined_call_operand.hbm [shape: bf16[16,32], index: 4, kind: input, shape index: {}]
  %s5 = inlined_call_operand.hbm [shape: f32[1,32], index: 5, kind: input, shape index: {}]
  %s6 = inlined_call_operand.vmem [shape: bf16[32,64], index: 6, kind: input, shape index: {}]
  %s7 = inlined_call_operand.hbm [shape: f32[1,64], index: 7, kind: input, shape index: {}]
  %s8 = inlined_call_operand.hbm [shape: bf16[64,64], index: 8, kind: input, shape index: {}]
  %s9 = inlined_call_operand.hbm [shape: f32[1,64], index: 9, kind: input, shape index: {}]
  %s10 = inlined_call_operand.vmem [shape: f32[8,64], index: 10, kind: output, shape index: {}]
  %s11 = sld [smem:[#allocation0]]
  $region74: #{dec_coach_net2_forward.1} parent=0
    _
  %s13 = ssub.s32 1, %s11
  %s14 = scalar_select 0, %s13, %s11
  $region1: #{dec_coach_net2_forward.1} parent=0
    #allocation2 [shape = 'u8[2048]{0}', space=vmem, size = 0x800, scoped, tag = 'input window, operand 3, single buffered']
    #allocation3 [shape = 's32[1]{0}', space=sflag, size = 0x4, scoped, tag = 'scoped memory for dec_coach_net2_forward.1']
    #allocation4 [shape = 'u8[4096]{0}', space=vmem, size = 0x1000, scoped, tag = 'input window, operand 4, single buffered']
    #allocation5 [shape = 's32[1]{0}', space=sflag, size = 0x4, scoped, tag = 'scoped memory for dec_coach_net2_forward.1']
    #allocation6 [shape = 'u8[512]{0}', space=vmem, size = 0x400, scoped, tag = 'input window, operand 5, single buffered']
    #allocation7 [shape = 'u8[512]{0}', space=vmem, size = 0x400, scoped, tag = 'input window, operand 7, single buffered']
    #allocation8 [shape = 's32[1]{0}', space=sflag, size = 0x4, scoped, tag = 'scoped memory for dec_coach_net2_forward.1']
    #allocation9 [shape = 'u8[16384]{0}', space=vmem, size = 0x4000, scoped, tag = 'input window, operand 8, single buffered']
    #allocation10 [shape = 'u8[512]{0}', space=vmem, size = 0x400, scoped, tag = 'input window, operand 9, single buffered']
    #allocation11 [shape = 's32[1]{0}', space=sflag, size = 0x4, scoped, tag = 'scoped memory for dec_coach_net2_forward.1']
    %15 = vsyncpa [#allocation3], 0
    %16 = vsyncpa [#allocation5], 0
    %17 = vsyncpa [#allocation8], 0
    %18 = vsyncpa [#allocation11], 0
    // Predicated region
    $region2: #{dec_coach_net2_forward.1} parent=1 // pred_check
      _
    $region3: #{dec_coach_net2_forward.1} parent=1 // pred_check_branch
      %20 = sbr.rel (0) target = $region5
    $region4: #{dec_coach_net2_forward.1} parent=1 // pred_region
      _
    $region5: #{dec_coach_net2_forward.1} parent=1 // pred_fallthru
      _
    // Predicated region
    $region6: #{dec_coach_net2_forward.1} parent=1 // pred_check
      _
    $region7: #{dec_coach_net2_forward.1} parent=1 // pred_check_branch
      %22 = sbr.rel (0) target = $region9
    $region8: #{dec_coach_net2_forward.1} parent=1 // pred_region
      _
    $region9: #{dec_coach_net2_forward.1} parent=1 // pred_fallthru
      _
    // Predicated region
    $region10: #{dec_coach_net2_forward.1} parent=1 // pred_check
      _
    $region11: #{dec_coach_net2_forward.1} parent=1 // pred_check_branch
      %24 = sbr.rel (0) target = $region13
    $region12: #{dec_coach_net2_forward.1} parent=1 // pred_region
      _
    $region13: #{dec_coach_net2_forward.1} parent=1 // pred_fallthru
      _
    // Predicated region
    $region14: #{dec_coach_net2_forward.1} parent=1 // pred_check
      _
    $region15: #{dec_coach_net2_forward.1} parent=1 // pred_check_branch
      %26 = sbr.rel (0) target = $region17
    $region16: #{dec_coach_net2_forward.1} parent=1 // pred_region
      %s28 = ssub.s32 64, 64
      %29 = vsyncadd [#allocation3], %s28
      %s31 = sshll.u32 [#allocation2], 4
      %s32 = int_to_ptr.vmem [resolvable:$true] %s31
      %34 = dma.hbm_to_vmem [thread:$0]  %s3, 64, %s32, [#allocation3]
    $region17: #{dec_coach_net2_forward.1} parent=1 // pred_fallthru
      _
    // Predicated region
    $region18: #{dec_coach_net2_forward.1} parent=1 // pred_check
      _
    $region19: #{dec_coach_net2_forward.1} parent=1 // pred_check_branch
      %36 = sbr.rel (0) target = $region21
    $region20: #{dec_coach_net2_forward.1} parent=1 // pred_region
      %s38 = ssub.s32 128, 128
      %39 = vsyncadd [#allocation5], %s38
      %s40 = sshll.u32 [#allocation4], 4
      %s41 = int_to_ptr.vmem [resolvable:$true] %s40
      %46 = dma.hbm_to_vmem [thread:$0]  %s4, 128, %s41, [#allocation5], 64, 64, 4
    $region21: #{dec_coach_net2_forward.1} parent=1 // pred_fallthru
      _
    // Predicated region
    $region22: #{dec_coach_net2_forward.1} parent=1 // pred_check
      _
    $region23: #{dec_coach_net2_forward.1} parent=1 // pred_check_branch
      %48 = sbr.rel (0) target = $region25
    $region24: #{dec_coach_net2_forward.1} parent=1 // pred_region
      %s50 = ssub.s32 16, 16
      %51 = vsyncadd [#allocation5], %s50
      %s53 = sshll.u32 [#allocation6], 4
      %s54 = int_to_ptr.vmem [resolvable:$true] %s53
      %56 = dma.hbm_to_vmem [thread:$0]  %s5, 16, %s54, [#allocation5]
    $region25: #{dec_coach_net2_forward.1} parent=1 // pred_fallthru
      _
    // Predicated region
    $region26: #{dec_coach_net2_forward.1} parent=1 // pred_check
      _
    $region27: #{dec_coach_net2_forward.1} parent=1 // pred_check_branch
      %58 = sbr.rel (0) target = $region29
    $region28: #{dec_coach_net2_forward.1} parent=1 // pred_region
      _
    $region29: #{dec_coach_net2_forward.1} parent=1 // pred_fallthru
      _
    // Predicated region
    $region30: #{dec_coach_net2_forward.1} parent=1 // pred_check
      _
    $region31: #{dec_coach_net2_forward.1} parent=1 // pred_check_branch
      %60 = sbr.rel (0) target = $region33
    $region32: #{dec_coach_net2_forward.1} parent=1 // pred_region
      %s62 = ssub.s32 16, 16
      %63 = vsyncadd [#allocation8], %s62
      %s65 = sshll.u32 [#allocation7], 4
      %s66 = int_to_ptr.vmem [resolvable:$true] %s65
      %68 = dma.hbm_to_vmem [thread:$0]  %s7, 16, %s66, [#allocation8]
    $region33: #{dec_coach_net2_forward.1} parent=1 // pred_fallthru
      _
    // Predicated region
    $region34: #{dec_coach_net2_forward.1} parent=1 // pred_check
      _
    $region35: #{dec_coach_net2_forward.1} parent=1 // pred_check_branch
      %70 = sbr.rel (0) target = $region37
    $region36: #{dec_coach_net2_forward.1} parent=1 // pred_region
      %s72 = ssub.s32 512, 512
      %73 = vsyncadd [#allocation8], %s72
      %s74 = sshll.u32 [#allocation9], 4
      %s75 = int_to_ptr.vmem [resolvable:$true] %s74
      %80 = dma.hbm_to_vmem [thread:$0]  %s8, 512, %s75, [#allocation8], 64, 64, 4
    $region37: #{dec_coach_net2_forward.1} parent=1 // pred_fallthru
      _
    // Predicated region
    $region38: #{dec_coach_net2_forward.1} parent=1 // pred_check
      _
    $region39: #{dec_coach_net2_forward.1} parent=1 // pred_check_branch
      %82 = sbr.rel (0) target = $region41
    $region40: #{dec_coach_net2_forward.1} parent=1 // pred_region
      %s84 = ssub.s32 16, 16
      %85 = vsyncadd [#allocation11], %s84
      %s87 = sshll.u32 [#allocation10], 4
      %s88 = int_to_ptr.vmem [resolvable:$true] %s87
      %90 = dma.hbm_to_vmem [thread:$0]  %s9, 16, %s88, [#allocation11]
    $region41: #{dec_coach_net2_forward.1} parent=1 // pred_fallthru
      _
    // Predicated region
    $region42: #{dec_coach_net2_forward.1} parent=1 // pred_check
      _
    $region43: #{dec_coach_net2_forward.1} parent=1 // pred_check_branch
      %92 = sbr.rel (0) target = $region45
    $region44: #{dec_coach_net2_forward.1} parent=1 // pred_region
      %93 = dma.done [#allocation3], 64
    $region45: #{dec_coach_net2_forward.1} parent=1 // pred_fallthru
      _
    // Predicated region
    $region46: #{dec_coach_net2_forward.1} parent=1 // pred_check
      _
    $region47: #{dec_coach_net2_forward.1} parent=1 // pred_check_branch
      %95 = sbr.rel (0) target = $region49
    $region48: #{dec_coach_net2_forward.1} parent=1 // pred_region
      %96 = dma.done [#allocation5], 128
    $region49: #{dec_coach_net2_forward.1} parent=1 // pred_fallthru
      _
    // Predicated region
    $region50: #{dec_coach_net2_forward.1} parent=1 // pred_check
      _
    $region51: #{dec_coach_net2_forward.1} parent=1 // pred_check_branch
      %98 = sbr.rel (0) target = $region53
    $region52: #{dec_coach_net2_forward.1} parent=1 // pred_region
      %99 = dma.done [#allocation5], 16
    $region53: #{dec_coach_net2_forward.1} parent=1 // pred_fallthru
      _
    // Predicated region
    $region54: #{dec_coach_net2_forward.1} parent=1 // pred_check
      _
    $region55: #{dec_coach_net2_forward.1} parent=1 // pred_check_branch
      %101 = sbr.rel (0) target = $region57
    $region56: #{dec_coach_net2_forward.1} parent=1 // pred_region
      %102 = dma.done [#allocation8], 16
    $region57: #{dec_coach_net2_forward.1} parent=1 // pred_fallthru
      _
    // Predicated region
    $region58: #{dec_coach_net2_forward.1} parent=1 // pred_check
      _
    $region59: #{dec_coach_net2_forward.1} parent=1 // pred_check_branch
      %104 = sbr.rel (0) target = $region61
    $region60: #{dec_coach_net2_forward.1} parent=1 // pred_region
      %105 = dma.done [#allocation8], 512
    $region61: #{dec_coach_net2_forward.1} parent=1 // pred_fallthru
      _
    // Predicated region
    $region62: #{dec_coach_net2_forward.1} parent=1 // pred_check
      _
    $region63: #{dec_coach_net2_forward.1} parent=1 // pred_check_branch
      %107 = sbr.rel (0) target = $region65
    $region64: #{dec_coach_net2_forward.1} parent=1 // pred_region
      %108 = dma.done [#allocation11], 16
    $region65: #{dec_coach_net2_forward.1} parent=1 // pred_fallthru
      _
    %v110 = vld [vmem:[%s0] sm:$0xf]
    %v111 = vld [vmem:[%s1] sm:$0xf]
    %v112 = vld [vmem:[%s2] sm:$0xff]
    %v113 = vld [vmem:[%s2 + $0x8] sm:$0xff]
    %v114 = vld [vmem:[%s2 + $0x10] sm:$0xff]
    %v115 = vld [vmem:[%s2 + $0x18] sm:$0xff]
    %v116 = vld [vmem:[#allocation2] sm:$0xf]
    %v118 = vlaneseq
    %v119 = vshrl.u32 %v118, 7
    %v120 = vsub.s32 0, %v119
    %v121 = vrot.slane %v116, %v120
    %v122 = vlaneseq
    %v123 = vshrl.u32 %v122, 7
    %v124 = vsub.s32 1, %v123
    %v125 = vrot.slane %v116, %v124
    %v126 = vlaneseq
    %v127 = vshrl.u32 %v126, 7
    %v128 = vsub.s32 2, %v127
    %v129 = vrot.slane %v116, %v128
    %v130 = vlaneseq
    %v131 = vshrl.u32 %v130, 7
    %v132 = vsub.s32 3, %v131
    %v133 = vrot.slane %v116, %v132
    %v142 = vunpack.c.l.b16 %v112
    %v143 = vunpack.c.h.b16 %v112
    %v144 = vunpack.c.l.b16 %v113
    %v145 = vunpack.c.h.b16 %v113
    %v146 = vunpack.c.l.b16 %v114
    %v147 = vunpack.c.h.b16 %v114
    %v148 = vunpack.c.l.b16 %v115
    %v149 = vunpack.c.h.b16 %v115
    %v150 = vpack.c.b16 %v146, %v142
    %v151 = vpack.c.b16 %v147, %v143
    %v152 = vpack.c.b16 %v148, %v144
    %v153 = vpack.c.b16 %v149, %v145
    %vm158 = vcmask 130048
    %v160 = vsel %vm158, %v111, 0
    %162 = vmatprep.subr.bf16.mxu0 0
    %163 = vmatpush1.bf16.msra.mxu0 0
    %164 = vmatprep.subr.bf16.mxu0 0
    %165 = vmatpush1.bf16.msra.mxu0 0
    %166 = vmatprep.subr.bf16.mxu0 0
    %167 = vmatpush1.bf16.msra.mxu0 0
    %168 = vmatprep.subr.bf16.mxu0 0
    %169 = vmatpush1.bf16.msra.mxu0 0
    %170 = vmatprep.subr.bf16.mxu0 0
    %171 = vmatpush1.bf16.msra.mxu0 0
    %172 = vmatprep.subr.bf16.mxu0 0
    %173 = vmatpush1.bf16.msra.mxu0 0
    %174 = vmatprep.subr.bf16.mxu0 0
    %175 = vmatpush1.bf16.msra.mxu0 0
    %176 = vmatprep.subr.bf16.mxu0 %v151
    %177 = vmatpush1.bf16.msra.mxu0 %v150
    %178 = vmatprep.subr.bf16.mxu0 0
    %179 = vmatpush2.bf16.msra.mxu0 0
    %180 = vmatprep.subr.bf16.mxu0 0
    %181 = vmatpush2.bf16.msra.mxu0 0
    %182 = vmatprep.subr.bf16.mxu0 0
    %183 = vmatpush2.bf16.msra.mxu0 0
    %184 = vmatprep.subr.bf16.mxu0 0
    %185 = vmatpush2.bf16.msra.mxu0 0
    %186 = vmatprep.subr.bf16.mxu0 0
    %187 = vmatpush2.bf16.msra.mxu0 0
    %188 = vmatprep.subr.bf16.mxu0 0
    %189 = vmatpush2.bf16.msra.mxu0 0
    %190 = vmatprep.subr.bf16.mxu0 0
    %191 = vmatpush2.bf16.msra.mxu0 0
    %192 = vmatprep.subr.bf16.mxu0 0
    %193 = vmatpush2.bf16.msra.mxu0 0
    %194 = vmatprep.mubr.bf16.mxu0 0
    %195 = vmatmul.mubr.bf16.gmra.mxu0 %v160
    %v196 = vpop.f32.mrf.mxu0
    %v197 = vadd.f32 %v121, %v196
    %v198 = vpop.f32.mrf.mxu0
    %v199 = vadd.f32 %v125, %v198
    %v200 = vpop.f32.mrf.mxu0
    %v201 = vpop.f32.mrf.mxu0
    %202 = vdwg.mxu0
    %203 = vmatprep.subr.bf16.mxu0 0
    %204 = vmatpush1.bf16.msra.mxu0 0
    %205 = vmatprep.subr.bf16.mxu0 0
    %206 = vmatpush1.bf16.msra.mxu0 0
    %207 = vmatprep.subr.bf16.mxu0 0
    %208 = vmatpush1.bf16.msra.mxu0 0
    %209 = vmatprep.subr.bf16.mxu0 0
    %210 = vmatpush1.bf16.msra.mxu0 0
    %211 = vmatprep.subr.bf16.mxu0 0
    %212 = vmatpush1.bf16.msra.mxu0 0
    %213 = vmatprep.subr.bf16.mxu0 0
    %214 = vmatpush1.bf16.msra.mxu0 0
    %215 = vmatprep.subr.bf16.mxu0 0
    %216 = vmatpush1.bf16.msra.mxu0 0
    %217 = vmatprep.subr.bf16.mxu0 %v153
    %218 = vmatpush1.bf16.msra.mxu0 %v152
    %219 = vmatprep.subr.bf16.mxu0 0
    %220 = vmatpush2.bf16.msra.mxu0 0
    %221 = vmatprep.subr.bf16.mxu0 0
    %222 = vmatpush2.bf16.msra.mxu0 0
    %223 = vmatprep.subr.bf16.mxu0 0
    %224 = vmatpush2.bf16.msra.mxu0 0
    %225 = vmatprep.subr.bf16.mxu0 0
    %226 = vmatpush2.bf16.msra.mxu0 0
    %227 = vmatprep.subr.bf16.mxu0 0
    %228 = vmatpush2.bf16.msra.mxu0 0
    %229 = vmatprep.subr.bf16.mxu0 0
    %230 = vmatpush2.bf16.msra.mxu0 0
    %231 = vmatprep.subr.bf16.mxu0 0
    %232 = vmatpush2.bf16.msra.mxu0 0
    %233 = vmatprep.subr.bf16.mxu0 0
    %234 = vmatpush2.bf16.msra.mxu0 0
    %235 = vmatprep.mubr.bf16.mxu0 0
    %236 = vmatmul.mubr.bf16.gmra.mxu0 %v160
    %v237 = vpop.f32.mrf.mxu0
    %v238 = vadd.f32 %v129, %v237
    %v239 = vpop.f32.mrf.mxu0
    %v240 = vadd.f32 %v133, %v239
    %v241 = vpop.f32.mrf.mxu0
    %v242 = vpop.f32.mrf.mxu0
    %243 = vdwg.mxu0
    %v244 = vld [vmem:[#allocation4] sm:$0xf]
    %v245 = vld [vmem:[#allocation4 + $0x4] sm:$0xf]
    %v246 = vld [vmem:[#allocation6] sm:$0x1]
    %v248 = vlaneseq
    %v249 = vshrl.u32 %v248, 7
    %v250 = vsub.s32 0, %v249
    %v251 = vrot.slane %v246, %v250
    %v255 = vunpack.c.l.b16 %v244
    %v256 = vunpack.c.l.b16 %v245
    %v257 = vpack.c.b16 %v256, %v255
    %259 = vmatprep.subr.bf16.mxu0 0
    %260 = vmatpush1.bf16.msra.mxu0 0
    %261 = vmatprep.subr.bf16.mxu0 0
    %262 = vmatpush1.bf16.msra.mxu0 0
    %263 = vmatprep.subr.bf16.mxu0 0
    %264 = vmatpush1.bf16.msra.mxu0 0
    %265 = vmatprep.subr.bf16.mxu0 0
    %266 = vmatpush1.bf16.msra.mxu0 0
    %267 = vmatprep.subr.bf16.mxu0 0
    %268 = vmatpush1.bf16.msra.mxu0 0
    %269 = vmatprep.subr.bf16.mxu0 0
    %270 = vmatpush1.bf16.msra.mxu0 0
    %271 = vmatprep.subr.bf16.mxu0 0
    %272 = vmatpush1.bf16.msra.mxu0 0
    %273 = vmatprep.subr.bf16.mxu0 0
    %274 = vmatpush1.bf16.msra.mxu0 %v257
    %275 = vmatprep.subr.bf16.mxu0 0
    %276 = vmatpush2.bf16.msra.mxu0 0
    %277 = vmatprep.subr.bf16.mxu0 0
    %278 = vmatpush2.bf16.msra.mxu0 0
    %279 = vmatprep.subr.bf16.mxu0 0
    %280 = vmatpush2.bf16.msra.mxu0 0
    %281 = vmatprep.subr.bf16.mxu0 0
    %282 = vmatpush2.bf16.msra.mxu0 0
    %283 = vmatprep.subr.bf16.mxu0 0
    %284 = vmatpush2.bf16.msra.mxu0 0
    %285 = vmatprep.subr.bf16.mxu0 0
    %286 = vmatpush2.bf16.msra.mxu0 0
    %287 = vmatprep.subr.bf16.mxu0 0
    %288 = vmatpush2.bf16.msra.mxu0 0
    %289 = vmatprep.subr.bf16.mxu0 0
    %290 = vmatpush2.bf16.msra.mxu0 0
    %291 = vmatprep.mubr.bf16.mxu0 0
    %292 = vmatmul.mubr.bf16.gmra.mxu0 %v160
    %v293 = vpop.f32.mrf.mxu0
    %v294 = vadd.f32 %v251, %v293
    %v295 = vpop.f32.mrf.mxu0
    %v296 = vpop.f32.mrf.mxu0
    %v297 = vpop.f32.mrf.mxu0
    %298 = vdwg.mxu0
    %v299 = vlaneseq
    %v300 = vshrl.u32 %v299, 7
    %v301 = vadd.s32 %v300, 8
    %v302 = vlaneseq
    %v303 = vand.u32 %v302, 127
    %v304 = vadd.s32 %v303, 128
    %v305 = vadd.s32 %v303, 256
    %v306 = vadd.s32 %v303, 384
    %v307 = vmul.u32 %v300, 32
    %v308 = vmul.u32 %v301, 32
    %vm309 = vcmp.ge.s32.totalorder %v303, %v307
    %vm310 = vcmp.ge.s32.totalorder %v304, %v307
    %vm311 = vcmp.ge.s32.totalorder %v305, %v307
    %vm312 = vcmp.ge.s32.totalorder %v306, %v307
    %vm313 = vcmp.ge.s32.totalorder %v303, %v308
    %vm314 = vcmp.ge.s32.totalorder %v304, %v308
    %vm315 = vcmp.ge.s32.totalorder %v305, %v308
    %vm316 = vcmp.ge.s32.totalorder %v306, %v308
    %v317 = vadd.s32 %v307, 32
    %v318 = vadd.s32 %v308, 32
    %vm319 = vcmp.lt.s32.totalorder %v303, %v317
    %vm320 = vcmp.lt.s32.totalorder %v304, %v317
    %vm321 = vcmp.lt.s32.totalorder %v305, %v317
    %vm322 = vcmp.lt.s32.totalorder %v306, %v317
    %vm323 = vcmp.lt.s32.totalorder %v303, %v318
    %vm324 = vcmp.lt.s32.totalorder %v304, %v318
    %vm325 = vcmp.lt.s32.totalorder %v305, %v318
    %vm326 = vcmp.lt.s32.totalorder %v306, %v318
    %vm327 = vmand %vm309, %vm319
    %vm328 = vmand %vm310, %vm320
    %vm329 = vmand %vm311, %vm321
    %vm330 = vmand %vm312, %vm322
    %vm331 = vmand %vm313, %vm323
    %vm332 = vmand %vm314, %vm324
    %vm333 = vmand %vm315, %vm325
    %vm334 = vmand %vm316, %vm326
    %v335 = vsel %vm327, 1, 0
    %v336 = vsel %vm328, 1, 0
    %v337 = vsel %vm329, 1, 0
    %v338 = vsel %vm330, 1, 0
    %v339 = vsel %vm331, 1, 0
    %v340 = vsel %vm332, 1, 0
    %v341 = vsel %vm333, 1, 0
    %v342 = vsel %vm334, 1, 0
    %v343 = vcvt.s32.f32 %v335
    %v344 = vcvt.s32.f32 %v336
    %v345 = vcvt.s32.f32 %v337
    %v346 = vcvt.s32.f32 %v338
    %v347 = vcvt.s32.f32 %v339
    %v348 = vcvt.s32.f32 %v340
    %v349 = vcvt.s32.f32 %v341
    %v350 = vcvt.s32.f32 %v342
    %v351 = vpack.c.bf16 %v347, %v343
    %v352 = vpack.c.bf16 %v348, %v344
    %v353 = vpack.c.bf16 %v349, %v345
    %v354 = vpack.c.bf16 %v350, %v346
    %v355 = vadd.s32 %v300, 16
    %v356 = vadd.s32 %v300, 24
    %v357 = vadd.s32 %v300, 32
    %v358 = vadd.s32 %v300, 40
    %v359 = vadd.s32 %v300, 48
    %v360 = vadd.s32 %v300, 56
    %v361 = vadd.s32 %v300, 64
    %v362 = vadd.s32 %v300, 72
    %v363 = vadd.s32 %v300, 80
    %v364 = vadd.s32 %v300, 88
    %v365 = vadd.s32 %v300, 96
    %v366 = vadd.s32 %v300, 104
    %v367 = vadd.s32 %v300, 112
    %v368 = vadd.s32 %v300, 120
    %v369 = vadd.s32 %v300, 128
    %v370 = vadd.s32 %v300, 136
    %v371 = vadd.s32 %v300, 144
    %v372 = vadd.s32 %v300, 152
    %v373 = vadd.s32 %v300, 160
    %v374 = vadd.s32 %v300, 168
    %v375 = vadd.s32 %v300, 176
    %v376 = vadd.s32 %v300, 184
    %v377 = vadd.s32 %v300, 192
    %v378 = vadd.s32 %v300, 200
    %v379 = vadd.s32 %v300, 208
    %v380 = vadd.s32 %v300, 216
    %v381 = vadd.s32 %v300, 224
    %v382 = vadd.s32 %v300, 232
    %v383 = vadd.s32 %v300, 240
    %v384 = vadd.s32 %v300, 248
    %v385 = vadd.s32 %v300, 256
    %v386 = vadd.s32 %v300, 264
    %v387 = vadd.s32 %v300, 272
    %v388 = vadd.s32 %v300, 280
    %v389 = vadd.s32 %v300, 288
    %v390 = vadd.s32 %v300, 296
    %v391 = vadd.s32 %v300, 304
    %v392 = vadd.s32 %v300, 312
    %v393 = vadd.s32 %v300, 320
    %v394 = vadd.s32 %v300, 328
    %v395 = vadd.s32 %v300, 336
    %v396 = vadd.s32 %v300, 344
    %v397 = vadd.s32 %v300, 352
    %v398 = vadd.s32 %v300, 360
    %v399 = vadd.s32 %v300, 368
    %v400 = vadd.s32 %v300, 376
    %v401 = vadd.s32 %v300, 384
    %v402 = vadd.s32 %v300, 392
    %v403 = vadd.s32 %v300, 400
    %v404 = vadd.s32 %v300, 408
    %v405 = vadd.s32 %v300, 416
    %v406 = vadd.s32 %v300, 424
    %v407 = vadd.s32 %v300, 432
    %v408 = vadd.s32 %v300, 440
    %v409 = vadd.s32 %v300, 448
    %v410 = vadd.s32 %v300, 456
    %v411 = vadd.s32 %v300, 464
    %v412 = vadd.s32 %v300, 472
    %v413 = vadd.s32 %v300, 480
    %v414 = vadd.s32 %v300, 488
    %v415 = vadd.s32 %v300, 496
    %v416 = vadd.s32 %v300, 504
    %v417 = vand.u32 %v300, 31
    %v418 = vand.u32 %v301, 31
    %v419 = vand.u32 %v355, 31
    %v420 = vand.u32 %v356, 31
    %v421 = vand.u32 %v357, 31
    %v422 = vand.u32 %v358, 31
    %v423 = vand.u32 %v359, 31
    %v424 = vand.u32 %v360, 31
    %v425 = vand.u32 %v361, 31
    %v426 = vand.u32 %v362, 31
    %v427 = vand.u32 %v363, 31
    %v428 = vand.u32 %v364, 31
    %v429 = vand.u32 %v365, 31
    %v430 = vand.u32 %v366, 31
    %v431 = vand.u32 %v367, 31
    %v432 = vand.u32 %v368, 31
    %v433 = vand.u32 %v369, 31
    %v434 = vand.u32 %v370, 31
    %v435 = vand.u32 %v371, 31
    %v436 = vand.u32 %v372, 31
    %v437 = vand.u32 %v373, 31
    %v438 = vand.u32 %v374, 31
    %v439 = vand.u32 %v375, 31
    %v440 = vand.u32 %v376, 31
    %v441 = vand.u32 %v377, 31
    %v442 = vand.u32 %v378, 31
    %v443 = vand.u32 %v379, 31
    %v444 = vand.u32 %v380, 31
    %v445 = vand.u32 %v381, 31
    %v446 = vand.u32 %v382, 31
    %v447 = vand.u32 %v383, 31
    %v448 = vand.u32 %v384, 31
    %v449 = vand.u32 %v385, 31
    %v450 = vand.u32 %v386, 31
    %v451 = vand.u32 %v387, 31
    %v452 = vand.u32 %v388, 31
    %v453 = vand.u32 %v389, 31
    %v454 = vand.u32 %v390, 31
    %v455 = vand.u32 %v391, 31
    %v456 = vand.u32 %v392, 31
    %v457 = vand.u32 %v393, 31
    %v458 = vand.u32 %v394, 31
    %v459 = vand.u32 %v395, 31
    %v460 = vand.u32 %v396, 31
    %v461 = vand.u32 %v397, 31
    %v462 = vand.u32 %v398, 31
    %v463 = vand.u32 %v399, 31
    %v464 = vand.u32 %v400, 31
    %v465 = vand.u32 %v401, 31
    %v466 = vand.u32 %v402, 31
    %v467 = vand.u32 %v403, 31
    %v468 = vand.u32 %v404, 31
    %v469 = vand.u32 %v405, 31
    %v470 = vand.u32 %v406, 31
    %v471 = vand.u32 %v407, 31
    %v472 = vand.u32 %v408, 31
    %v473 = vand.u32 %v409, 31
    %v474 = vand.u32 %v410, 31
    %v475 = vand.u32 %v411, 31
    %v476 = vand.u32 %v412, 31
    %v477 = vand.u32 %v413, 31
    %v478 = vand.u32 %v414, 31
    %v479 = vand.u32 %v415, 31
    %v480 = vand.u32 %v416, 31
    %vm481 = vcmp.eq.s32.totalorder %v417, %v303
    %vm482 = vcmp.eq.s32.totalorder %v418, %v303
    %vm483 = vcmp.eq.s32.totalorder %v419, %v303
    %vm484 = vcmp.eq.s32.totalorder %v420, %v303
    %vm485 = vcmp.eq.s32.totalorder %v421, %v303
    %vm486 = vcmp.eq.s32.totalorder %v422, %v303
    %vm487 = vcmp.eq.s32.totalorder %v423, %v303
    %vm488 = vcmp.eq.s32.totalorder %v424, %v303
    %vm489 = vcmp.eq.s32.totalorder %v425, %v303
    %vm490 = vcmp.eq.s32.totalorder %v426, %v303
    %vm491 = vcmp.eq.s32.totalorder %v427, %v303
    %vm492 = vcmp.eq.s32.totalorder %v428, %v303
    %vm493 = vcmp.eq.s32.totalorder %v429, %v303
    %vm494 = vcmp.eq.s32.totalorder %v430, %v303
    %vm495 = vcmp.eq.s32.totalorder %v431, %v303
    %vm496 = vcmp.eq.s32.totalorder %v432, %v303
    %vm497 = vcmp.eq.s32.totalorder %v433, %v303
    %vm498 = vcmp.eq.s32.totalorder %v434, %v303
    %vm499 = vcmp.eq.s32.totalorder %v435, %v303
    %vm500 = vcmp.eq.s32.totalorder %v436, %v303
    %vm501 = vcmp.eq.s32.totalorder %v437, %v303
    %vm502 = vcmp.eq.s32.totalorder %v438, %v303
    %vm503 = vcmp.eq.s32.totalorder %v439, %v303
    %vm504 = vcmp.eq.s32.totalorder %v440, %v303
    %vm505 = vcmp.eq.s32.totalorder %v441, %v303
    %vm506 = vcmp.eq.s32.totalorder %v442, %v303
    %vm507 = vcmp.eq.s32.totalorder %v443, %v303
    %vm508 = vcmp.eq.s32.totalorder %v444, %v303
    %vm509 = vcmp.eq.s32.totalorder %v445, %v303
    %vm510 = vcmp.eq.s32.totalorder %v446, %v303
    %vm511 = vcmp.eq.s32.totalorder %v447, %v303
    %vm512 = vcmp.eq.s32.totalorder %v448, %v303
    %vm513 = vcmp.eq.s32.totalorder %v449, %v303
    %vm514 = vcmp.eq.s32.totalorder %v450, %v303
    %vm515 = vcmp.eq.s32.totalorder %v451, %v303
    %vm516 = vcmp.eq.s32.totalorder %v452, %v303
    %vm517 = vcmp.eq.s32.totalorder %v453, %v303
    %vm518 = vcmp.eq.s32.totalorder %v454, %v303
    %vm519 = vcmp.eq.s32.totalorder %v455, %v303
    %vm520 = vcmp.eq.s32.totalorder %v456, %v303
    %vm521 = vcmp.eq.s32.totalorder %v457, %v303
    %vm522 = vcmp.eq.s32.totalorder %v458, %v303
    %vm523 = vcmp.eq.s32.totalorder %v459, %v303
    %vm524 = vcmp.eq.s32.totalorder %v460, %v303
    %vm525 = vcmp.eq.s32.totalorder %v461, %v303
    %vm526 = vcmp.eq.s32.totalorder %v462, %v303
    %vm527 = vcmp.eq.s32.totalorder %v463, %v303
    %vm528 = vcmp.eq.s32.totalorder %v464, %v303
    %vm529 = vcmp.eq.s32.totalorder %v465, %v303
    %vm530 = vcmp.eq.s32.totalorder %v466, %v303
    %vm531 = vcmp.eq.s32.totalorder %v467, %v303
    %vm532 = vcmp.eq.s32.totalorder %v468, %v303
    %vm533 = vcmp.eq.s32.totalorder %v469, %v303
    %vm534 = vcmp.eq.s32.totalorder %v470, %v303
    %vm535 = vcmp.eq.s32.totalorder %v471, %v303
    %vm536 = vcmp.eq.s32.totalorder %v472, %v303
    %vm537 = vcmp.eq.s32.totalorder %v473, %v303
    %vm538 = vcmp.eq.s32.totalorder %v474, %v303
    %vm539 = vcmp.eq.s32.totalorder %v475, %v303
    %vm540 = vcmp.eq.s32.totalorder %v476, %v303
    %vm541 = vcmp.eq.s32.totalorder %v477, %v303
    %vm542 = vcmp.eq.s32.totalorder %v478, %v303
    %vm543 = vcmp.eq.s32.totalorder %v479, %v303
    %vm544 = vcmp.eq.s32.totalorder %v480, %v303
    %v545 = vsel %vm481, 1, 0
    %v546 = vsel %vm482, 1, 0
    %v547 = vsel %vm483, 1, 0
    %v548 = vsel %vm484, 1, 0
    %v549 = vsel %vm485, 1, 0
    %v550 = vsel %vm486, 1, 0
    %v551 = vsel %vm487, 1, 0
    %v552 = vsel %vm488, 1, 0
    %v553 = vsel %vm489, 1, 0
    %v554 = vsel %vm490, 1, 0
    %v555 = vsel %vm491, 1, 0
    %v556 = vsel %vm492, 1, 0
    %v557 = vsel %vm493, 1, 0
    %v558 = vsel %vm494, 1, 0
    %v559 = vsel %vm495, 1, 0
    %v560 = vsel %vm496, 1, 0
    %v561 = vsel %vm497, 1, 0
    %v562 = vsel %vm498, 1, 0
    %v563 = vsel %vm499, 1, 0
    %v564 = vsel %vm500, 1, 0
    %v565 = vsel %vm501, 1, 0
    %v566 = vsel %vm502, 1, 0
    %v567 = vsel %vm503, 1, 0
    %v568 = vsel %vm504, 1, 0
    %v569 = vsel %vm505, 1, 0
    %v570 = vsel %vm506, 1, 0
    %v571 = vsel %vm507, 1, 0
    %v572 = vsel %vm508, 1, 0
    %v573 = vsel %vm509, 1, 0
    %v574 = vsel %vm510, 1, 0
    %v575 = vsel %vm511, 1, 0
    %v576 = vsel %vm512, 1, 0
    %v577 = vsel %vm513, 1, 0
    %v578 = vsel %vm514, 1, 0
    %v579 = vsel %vm515, 1, 0
    %v580 = vsel %vm516, 1, 0
    %v581 = vsel %vm517, 1, 0
    %v582 = vsel %vm518, 1, 0
    %v583 = vsel %vm519, 1, 0
    %v584 = vsel %vm520, 1, 0
    %v585 = vsel %vm521, 1, 0
    %v586 = vsel %vm522, 1, 0
    %v587 = vsel %vm523, 1, 0
    %v588 = vsel %vm524, 1, 0
    %v589 = vsel %vm525, 1, 0
    %v590 = vsel %vm526, 1, 0
    %v591 = vsel %vm527, 1, 0
    %v592 = vsel %vm528, 1, 0
    %v593 = vsel %vm529, 1, 0
    %v594 = vsel %vm530, 1, 0
    %v595 = vsel %vm531, 1, 0
    %v596 = vsel %vm532, 1, 0
    %v597 = vsel %vm533, 1, 0
    %v598 = vsel %vm534, 1, 0
    %v599 = vsel %vm535, 1, 0
    %v600 = vsel %vm536, 1, 0
    %v601 = vsel %vm537, 1, 0
    %v602 = vsel %vm538, 1, 0
    %v603 = vsel %vm539, 1, 0
    %v604 = vsel %vm540, 1, 0
    %v605 = vsel %vm541, 1, 0
    %v606 = vsel %vm542, 1, 0
    %v607 = vsel %vm543, 1, 0
    %v608 = vsel %vm544, 1, 0
    %v609 = vcvt.s32.f32 %v545
    %v610 = vcvt.s32.f32 %v546
    %v611 = vcvt.s32.f32 %v547
    %v612 = vcvt.s32.f32 %v548
    %v613 = vcvt.s32.f32 %v549
    %v614 = vcvt.s32.f32 %v550
    %v615 = vcvt.s32.f32 %v551
    %v616 = vcvt.s32.f32 %v552
    %v617 = vcvt.s32.f32 %v553
    %v618 = vcvt.s32.f32 %v554
    %v619 = vcvt.s32.f32 %v555
    %v620 = vcvt.s32.f32 %v556
    %v621 = vcvt.s32.f32 %v557
    %v622 = vcvt.s32.f32 %v558
    %v623 = vcvt.s32.f32 %v559
    %v624 = vcvt.s32.f32 %v560
    %v625 = vcvt.s32.f32 %v561
    %v626 = vcvt.s32.f32 %v562
    %v627 = vcvt.s32.f32 %v563
    %v628 = vcvt.s32.f32 %v564
    %v629 = vcvt.s32.f32 %v565
    %v630 = vcvt.s32.f32 %v566
    %v631 = vcvt.s32.f32 %v567
    %v632 = vcvt.s32.f32 %v568
    %v633 = vcvt.s32.f32 %v569
    %v634 = vcvt.s32.f32 %v570
    %v635 = vcvt.s32.f32 %v571
    %v636 = vcvt.s32.f32 %v572
    %v637 = vcvt.s32.f32 %v573
    %v638 = vcvt.s32.f32 %v574
    %v639 = vcvt.s32.f32 %v575
    %v640 = vcvt.s32.f32 %v576
    %v641 = vcvt.s32.f32 %v577
    %v642 = vcvt.s32.f32 %v578
    %v643 = vcvt.s32.f32 %v579
    %v644 = vcvt.s32.f32 %v580
    %v645 = vcvt.s32.f32 %v581
    %v646 = vcvt.s32.f32 %v582
    %v647 = vcvt.s32.f32 %v583
    %v648 = vcvt.s32.f32 %v584
    %v649 = vcvt.s32.f32 %v585
    %v650 = vcvt.s32.f32 %v586
    %v651 = vcvt.s32.f32 %v587
    %v652 = vcvt.s32.f32 %v588
    %v653 = vcvt.s32.f32 %v589
    %v654 = vcvt.s32.f32 %v590
    %v655 = vcvt.s32.f32 %v591
    %v656 = vcvt.s32.f32 %v592
    %v657 = vcvt.s32.f32 %v593
    %v658 = vcvt.s32.f32 %v594
    %v659 = vcvt.s32.f32 %v595
    %v660 = vcvt.s32.f32 %v596
    %v661 = vcvt.s32.f32 %v597
    %v662 = vcvt.s32.f32 %v598
    %v663 = vcvt.s32.f32 %v599
    %v664 = vcvt.s32.f32 %v600
    %v665 = vcvt.s32.f32 %v601
    %v666 = vcvt.s32.f32 %v602
    %v667 = vcvt.s32.f32 %v603
    %v668 = vcvt.s32.f32 %v604
    %v669 = vcvt.s32.f32 %v605
    %v670 = vcvt.s32.f32 %v606
    %v671 = vcvt.s32.f32 %v607
    %v672 = vcvt.s32.f32 %v608
    %v673 = vpack.c.bf16 %v610, %v609
    %v674 = vpack.c.bf16 %v612, %v611
    %v675 = vpack.c.bf16 %v614, %v613
    %v676 = vpack.c.bf16 %v616, %v615
    %v677 = vpack.c.bf16 %v618, %v617
    %v678 = vpack.c.bf16 %v620, %v619
    %v679 = vpack.c.bf16 %v622, %v621
    %v680 = vpack.c.bf16 %v624, %v623
    %v681 = vpack.c.bf16 %v626, %v625
    %v682 = vpack.c.bf16 %v628, %v627
    %v683 = vpack.c.bf16 %v630, %v629
    %v684 = vpack.c.bf16 %v632, %v631
    %v685 = vpack.c.bf16 %v634, %v633
    %v686 = vpack.c.bf16 %v636, %v635
    %v687 = vpack.c.bf16 %v638, %v637
    %v688 = vpack.c.bf16 %v640, %v639
    %v689 = vpack.c.bf16 %v642, %v641
    %v690 = vpack.c.bf16 %v644, %v643
    %v691 = vpack.c.bf16 %v646, %v645
    %v692 = vpack.c.bf16 %v648, %v647
    %v693 = vpack.c.bf16 %v650, %v649
    %v694 = vpack.c.bf16 %v652, %v651
    %v695 = vpack.c.bf16 %v654, %v653
    %v696 = vpack.c.bf16 %v656, %v655
    %v697 = vpack.c.bf16 %v658, %v657
    %v698 = vpack.c.bf16 %v660, %v659
    %v699 = vpack.c.bf16 %v662, %v661
    %v700 = vpack.c.bf16 %v664, %v663
    %v701 = vpack.c.bf16 %v666, %v665
    %v702 = vpack.c.bf16 %v668, %v667
    %v703 = vpack.c.bf16 %v670, %v669
    %v704 = vpack.c.bf16 %v672, %v671
    %v706 = vsel %vm158, %v110, 0
    %708 = vmatprep.subr.bf16.mxu0 0
    %709 = vmatpush1.bf16.msra.mxu0 0
    %710 = vmatprep.subr.bf16.mxu0 0
    %711 = vmatpush1.bf16.msra.mxu0 0
    %712 = vmatprep.subr.bf16.mxu0 0
    %713 = vmatpush1.bf16.msra.mxu0 0
    %714 = vmatprep.subr.bf16.mxu0 0
    %715 = vmatpush1.bf16.msra.mxu0 0
    %716 = vmatprep.subr.bf16.mxu0 0
    %717 = vmatpush1.bf16.msra.mxu0 0
    %718 = vmatprep.subr.bf16.mxu0 0
    %719 = vmatpush1.bf16.msra.mxu0 0
    %720 = vmatprep.subr.bf16.mxu0 0
    %721 = vmatpush1.bf16.msra.mxu0 0
    %722 = vmatprep.subr.bf16.mxu0 %v352
    %723 = vmatpush1.bf16.msra.mxu0 %v351
    %724 = vmatprep.subr.bf16.mxu0 0
    %725 = vmatpush2.bf16.msra.mxu0 0
    %726 = vmatprep.subr.bf16.mxu0 0
    %727 = vmatpush2.bf16.msra.mxu0 0
    %728 = vmatprep.subr.bf16.mxu0 0
    %729 = vmatpush2.bf16.msra.mxu0 0
    %730 = vmatprep.subr.bf16.mxu0 0
    %731 = vmatpush2.bf16.msra.mxu0 0
    %732 = vmatprep.subr.bf16.mxu0 0
    %733 = vmatpush2.bf16.msra.mxu0 0
    %734 = vmatprep.subr.bf16.mxu0 0
    %735 = vmatpush2.bf16.msra.mxu0 0
    %736 = vmatprep.subr.bf16.mxu0 0
    %737 = vmatpush2.bf16.msra.mxu0 0
    %738 = vmatprep.subr.bf16.mxu0 0
    %739 = vmatpush2.bf16.msra.mxu0 0
    %740 = vmatprep.mubr.bf16.mxu0 0
    %741 = vmatmul.mubr.bf16.gmra.mxu0 %v706
    %v742 = vpop.f32.mrf.mxu0
    %v743 = vadd.f32 0.0, %v742
    %v744 = vpop.f32.mrf.mxu0
    %v745 = vadd.f32 0.0, %v744
    %v746 = vpop.f32.mrf.mxu0
    %v747 = vpop.f32.mrf.mxu0
    %748 = vdwg.mxu0
    %749 = vmatprep.subr.bf16.mxu0 0
    %750 = vmatpush1.bf16.msra.mxu0 0
    %751 = vmatprep.subr.bf16.mxu0 0
    %752 = vmatpush1.bf16.msra.mxu0 0
    %753 = vmatprep.subr.bf16.mxu0 0
    %754 = vmatpush1.bf16.msra.mxu0 0
    %755 = vmatprep.subr.bf16.mxu0 0
    %756 = vmatpush1.bf16.msra.mxu0 0
    %757 = vmatprep.subr.bf16.mxu0 0
    %758 = vmatpush1.bf16.msra.mxu0 0
    %759 = vmatprep.subr.bf16.mxu0 0
    %760 = vmatpush1.bf16.msra.mxu0 0
    %761 = vmatprep.subr.bf16.mxu0 0
    %762 = vmatpush1.bf16.msra.mxu0 0
    %763 = vmatprep.subr.bf16.mxu0 %v354
    %764 = vmatpush1.bf16.msra.mxu0 %v353
    %765 = vmatprep.subr.bf16.mxu0 0
    %766 = vmatpush2.bf16.msra.mxu0 0
    %767 = vmatprep.subr.bf16.mxu0 0
    %768 = vmatpush2.bf16.msra.mxu0 0
    %769 = vmatprep.subr.bf16.mxu0 0
    %770 = vmatpush2.bf16.msra.mxu0 0
    %771 = vmatprep.subr.bf16.mxu0 0
    %772 = vmatpush2.bf16.msra.mxu0 0
    %773 = vmatprep.subr.bf16.mxu0 0
    %774 = vmatpush2.bf16.msra.mxu0 0
    %775 = vmatprep.subr.bf16.mxu0 0
    %776 = vmatpush2.bf16.msra.mxu0 0
    %777 = vmatprep.subr.bf16.mxu0 0
    %778 = vmatpush2.bf16.msra.mxu0 0
    %779 = vmatprep.subr.bf16.mxu0 0
    %780 = vmatpush2.bf16.msra.mxu0 0
    %781 = vmatprep.mubr.bf16.mxu0 0
    %782 = vmatmul.mubr.bf16.gmra.mxu0 %v706
    %v783 = vpop.f32.mrf.mxu0
    %v784 = vadd.f32 0.0, %v783
    %v785 = vpop.f32.mrf.mxu0
    %v786 = vadd.f32 0.0, %v785
    %v787 = vpop.f32.mrf.mxu0
    %v788 = vpop.f32.mrf.mxu0
    %789 = vdwg.mxu0
    %v790 = vmul.f32 %v743, %v197
    %v791 = vmul.f32 %v745, %v199
    %v792 = vmul.f32 %v784, %v238
    %v793 = vmul.f32 %v786, %v240
    %v794 = vpack.c.bf16 %v790, %v790
    %v795 = vpack.c.bf16 %v791, %v791
    %v796 = vpack.c.bf16 %v792, %v792
    %v797 = vpack.c.bf16 %v793, %v793
    %798 = vmatprep.subr.bf16.mxu0 0
    %799 = vmatpush1.bf16.msra.mxu0 %v680
    %800 = vmatprep.subr.bf16.mxu0 0
    %801 = vmatpush1.bf16.msra.mxu0 %v679
    %802 = vmatprep.subr.bf16.mxu0 0
    %803 = vmatpush1.bf16.msra.mxu0 %v678
    %804 = vmatprep.subr.bf16.mxu0 0
    %805 = vmatpush1.bf16.msra.mxu0 %v677
    %806 = vmatprep.subr.bf16.mxu0 0
    %807 = vmatpush1.bf16.msra.mxu0 %v676
    %808 = vmatprep.subr.bf16.mxu0 0
    %809 = vmatpush1.bf16.msra.mxu0 %v675
    %810 = vmatprep.subr.bf16.mxu0 0
    %811 = vmatpush1.bf16.msra.mxu0 %v674
    %812 = vmatprep.subr.bf16.mxu0 0
    %813 = vmatpush1.bf16.msra.mxu0 %v673
    %814 = vmatprep.subr.bf16.mxu0 0
    %815 = vmatpush2.bf16.msra.mxu0 %v688
    %816 = vmatprep.subr.bf16.mxu0 0
    %817 = vmatpush2.bf16.msra.mxu0 %v687
    %818 = vmatprep.subr.bf16.mxu0 0
    %819 = vmatpush2.bf16.msra.mxu0 %v686
    %820 = vmatprep.subr.bf16.mxu0 0
    %821 = vmatpush2.bf16.msra.mxu0 %v685
    %822 = vmatprep.subr.bf16.mxu0 0
    %823 = vmatpush2.bf16.msra.mxu0 %v684
    %824 = vmatprep.subr.bf16.mxu0 0
    %825 = vmatpush2.bf16.msra.mxu0 %v683
    %826 = vmatprep.subr.bf16.mxu0 0
    %827 = vmatpush2.bf16.msra.mxu0 %v682
    %828 = vmatprep.subr.bf16.mxu0 0
    %829 = vmatpush2.bf16.msra.mxu0 %v681
    %830 = vmatprep.mubr.bf16.mxu0 %v795
    %831 = vmatmul.mubr.bf16.gmra.mxu0 %v794
    %v832 = vpop.f32.mrf.mxu0
    %v833 = vadd.f32 %v294, %v832
    %v834 = vpop.f32.mrf.mxu0
    %v835 = vpop.f32.mrf.mxu0
    %v836 = vpop.f32.mrf.mxu0
    %837 = vdwg.mxu0
    %838 = vmatprep.subr.bf16.mxu0 0
    %839 = vmatpush1.bf16.msra.mxu0 %v696
    %840 = vmatprep.subr.bf16.mxu0 0
    %841 = vmatpush1.bf16.msra.mxu0 %v695
    %842 = vmatprep.subr.bf16.mxu0 0
    %843 = vmatpush1.bf16.msra.mxu0 %v694
    %844 = vmatprep.subr.bf16.mxu0 0
    %845 = vmatpush1.bf16.msra.mxu0 %v693
    %846 = vmatprep.subr.bf16.mxu0 0
    %847 = vmatpush1.bf16.msra.mxu0 %v692
    %848 = vmatprep.subr.bf16.mxu0 0
    %849 = vmatpush1.bf16.msra.mxu0 %v691
    %850 = vmatprep.subr.bf16.mxu0 0
    %851 = vmatpush1.bf16.msra.mxu0 %v690
    %852 = vmatprep.subr.bf16.mxu0 0
    %853 = vmatpush1.bf16.msra.mxu0 %v689
    %854 = vmatprep.subr.bf16.mxu0 0
    %855 = vmatpush2.bf16.msra.mxu0 %v704
    %856 = vmatprep.subr.bf16.mxu0 0
    %857 = vmatpush2.bf16.msra.mxu0 %v703
    %858 = vmatprep.subr.bf16.mxu0 0
    %859 = vmatpush2.bf16.msra.mxu0 %v702
    %860 = vmatprep.subr.bf16.mxu0 0
    %861 = vmatpush2.bf16.msra.mxu0 %v701
    %862 = vmatprep.subr.bf16.mxu0 0
    %863 = vmatpush2.bf16.msra.mxu0 %v700
    %864 = vmatprep.subr.bf16.mxu0 0
    %865 = vmatpush2.bf16.msra.mxu0 %v699
    %866 = vmatprep.subr.bf16.mxu0 0
    %867 = vmatpush2.bf16.msra.mxu0 %v698
    %868 = vmatprep.subr.bf16.mxu0 0
    %869 = vmatpush2.bf16.msra.mxu0 %v697
    %870 = vmatprep.mubr.bf16.mxu0 %v797
    %871 = vmatmul.mubr.bf16.gmra.mxu0 %v796
    %v872 = vpop.f32.mrf.mxu0
    %v873 = vadd.f32 %v833, %v872
    %v874 = vpop.f32.mrf.mxu0
    %v875 = vpop.f32.mrf.mxu0
    %v876 = vpop.f32.mrf.mxu0
    %877 = vdwg.mxu0
    %vm878 = vcmp.gt.f32.partialorder %v873, 0.0
    %v879 = vmin.f32 %v873, 0.0
    %v880 = vmul.f32 %v879, 1.442695
    %v881 = vpow.pop %v880
    %v882 = vsub.f32 %v881, 1.0
    %v883 = vsel %vm878, %v873, %v882
    %v884 = vpack.c.bf16 %v883, %v883
    %v885 = vld [vmem:[%s6] sm:$0xf]
    %v886 = vld [vmem:[%s6 + $0x4] sm:$0xf]
    %v887 = vld [vmem:[%s6 + $0x8] sm:$0xf]
    %v888 = vld [vmem:[%s6 + $0xc] sm:$0xf]
    %v889 = vld [vmem:[#allocation7] sm:$0x1]
    %v891 = vlaneseq
    %v892 = vshrl.u32 %v891, 7
    %v893 = vsub.s32 0, %v892
    %v894 = vrot.slane %v889, %v893
    %v900 = vunpack.c.l.b16 %v885
    %v901 = vunpack.c.l.b16 %v886
    %v902 = vunpack.c.l.b16 %v887
    %v903 = vunpack.c.l.b16 %v888
    %v904 = vpack.c.b16 %v901, %v900
    %v905 = vpack.c.b16 %v903, %v902
    %vm908 = vcmask 261120
    %v910 = vsel %vm908, %v884, 0
    %912 = vmatprep.subr.bf16.mxu0 0
    %913 = vmatpush1.bf16.msra.mxu0 0
    %914 = vmatprep.subr.bf16.mxu0 0
    %915 = vmatpush1.bf16.msra.mxu0 0
    %916 = vmatprep.subr.bf16.mxu0 0
    %917 = vmatpush1.bf16.msra.mxu0 0
    %918 = vmatprep.subr.bf16.mxu0 0
    %919 = vmatpush1.bf16.msra.mxu0 0
    %920 = vmatprep.subr.bf16.mxu0 0
    %921 = vmatpush1.bf16.msra.mxu0 0
    %922 = vmatprep.subr.bf16.mxu0 0
    %923 = vmatpush1.bf16.msra.mxu0 0
    %924 = vmatprep.subr.bf16.mxu0 0
    %925 = vmatpush1.bf16.msra.mxu0 %v905
    %926 = vmatprep.subr.bf16.mxu0 0
    %927 = vmatpush1.bf16.msra.mxu0 %v904
    %928 = vmatprep.subr.bf16.mxu0 0
    %929 = vmatpush2.bf16.msra.mxu0 0
    %930 = vmatprep.subr.bf16.mxu0 0
    %931 = vmatpush2.bf16.msra.mxu0 0
    %932 = vmatprep.subr.bf16.mxu0 0
    %933 = vmatpush2.bf16.msra.mxu0 0
    %934 = vmatprep.subr.bf16.mxu0 0
    %935 = vmatpush2.bf16.msra.mxu0 0
    %936 = vmatprep.subr.bf16.mxu0 0
    %937 = vmatpush2.bf16.msra.mxu0 0
    %938 = vmatprep.subr.bf16.mxu0 0
    %939 = vmatpush2.bf16.msra.mxu0 0
    %940 = vmatprep.subr.bf16.mxu0 0
    %941 = vmatpush2.bf16.msra.mxu0 0
    %942 = vmatprep.subr.bf16.mxu0 0
    %943 = vmatpush2.bf16.msra.mxu0 0
    %944 = vmatprep.mubr.bf16.mxu0 0
    %945 = vmatmul.mubr.bf16.gmra.mxu0 %v910
    %v946 = vpop.f32.mrf.mxu0
    %v947 = vadd.f32 %v894, %v946
    %v948 = vpop.f32.mrf.mxu0
    %v949 = vpop.f32.mrf.mxu0
    %v950 = vpop.f32.mrf.mxu0
    %951 = vdwg.mxu0
    %vm952 = vcmp.gt.f32.partialorder %v947, 0.0
    %v953 = vmul.f32 %v947, 0.01
    %v954 = vsel %vm952, %v947, %v953
    %v955 = vpack.c.bf16 %v954, %v954
    %v956 = vld [vmem:[#allocation9] sm:$0xf]
    %v957 = vld [vmem:[#allocation9 + $0x4] sm:$0xf]
    %v958 = vld [vmem:[#allocation9 + $0x8] sm:$0xf]
    %v959 = vld [vmem:[#allocation9 + $0xc] sm:$0xf]
    %v960 = vld [vmem:[#allocation9 + $0x10] sm:$0xf]
    %v961 = vld [vmem:[#allocation9 + $0x14] sm:$0xf]
    %v962 = vld [vmem:[#allocation9 + $0x18] sm:$0xf]
    %v963 = vld [vmem:[#allocation9 + $0x1c] sm:$0xf]
    %v964 = vld [vmem:[#allocation10] sm:$0x1]
    %v966 = vlaneseq
    %v967 = vshrl.u32 %v966, 7
    %v968 = vsub.s32 0, %v967
    %v969 = vrot.slane %v964, %v968
    %v979 = vunpack.c.l.b16 %v956
    %v980 = vunpack.c.l.b16 %v957
    %v981 = vunpack.c.l.b16 %v958
    %v982 = vunpack.c.l.b16 %v959
    %v983 = vunpack.c.l.b16 %v960
    %v984 = vunpack.c.l.b16 %v961
    %v985 = vunpack.c.l.b16 %v962
    %v986 = vunpack.c.l.b16 %v963
    %v987 = vpack.c.b16 %v980, %v979
    %v988 = vpack.c.b16 %v982, %v981
    %v989 = vpack.c.b16 %v984, %v983
    %v990 = vpack.c.b16 %v986, %v985
    %vm995 = vcmask 523264
    %v997 = vsel %vm995, %v955, 0
    %999 = vmatprep.subr.bf16.mxu0 0
    %1000 = vmatpush1.bf16.msra.mxu0 0
    %1001 = vmatprep.subr.bf16.mxu0 0
    %1002 = vmatpush1.bf16.msra.mxu0 0
    %1003 = vmatprep.subr.bf16.mxu0 0
    %1004 = vmatpush1.bf16.msra.mxu0 0
    %1005 = vmatprep.subr.bf16.mxu0 0
    %1006 = vmatpush1.bf16.msra.mxu0 0
    %1007 = vmatprep.subr.bf16.mxu0 0
    %1008 = vmatpush1.bf16.msra.mxu0 %v990
    %1009 = vmatprep.subr.bf16.mxu0 0
    %1010 = vmatpush1.bf16.msra.mxu0 %v989
    %1011 = vmatprep.subr.bf16.mxu0 0
    %1012 = vmatpush1.bf16.msra.mxu0 %v988
    %1013 = vmatprep.subr.bf16.mxu0 0
    %1014 = vmatpush1.bf16.msra.mxu0 %v987
    %1015 = vmatprep.subr.bf16.mxu0 0
    %1016 = vmatpush2.bf16.msra.mxu0 0
    %1017 = vmatprep.subr.bf16.mxu0 0
    %1018 = vmatpush2.bf16.msra.mxu0 0
    %1019 = vmatprep.subr.bf16.mxu0 0
    %1020 = vmatpush2.bf16.msra.mxu0 0
    %1021 = vmatprep.subr.bf16.mxu0 0
    %1022 = vmatpush2.bf16.msra.mxu0 0
    %1023 = vmatprep.subr.bf16.mxu0 0
    %1024 = vmatpush2.bf16.msra.mxu0 0
    %1025 = vmatprep.subr.bf16.mxu0 0
    %1026 = vmatpush2.bf16.msra.mxu0 0
    %1027 = vmatprep.subr.bf16.mxu0 0
    %1028 = vmatpush2.bf16.msra.mxu0 0
    %1029 = vmatprep.subr.bf16.mxu0 0
    %1030 = vmatpush2.bf16.msra.mxu0 0
    %1031 = vmatprep.mubr.bf16.mxu0 0
    %1032 = vmatmul.mubr.bf16.gmra.mxu0 %v997
    %v1033 = vpop.f32.mrf.mxu0
    %v1034 = vadd.f32 %v969, %v1033
    %v1035 = vpop.f32.mrf.mxu0
    %v1036 = vpop.f32.mrf.mxu0
    %v1037 = vpop.f32.mrf.mxu0
    %1038 = vdwg.mxu0
    %v1039 = vmin.f32 %v1034, 80.0
    %v1040 = vmul.f32 %v1039, 1.442695
    %v1041 = vpow.pop %v1040
    %v1042 = vmax.f32 %v1041, 0.002
    %v1043 = vrsqrt.pop %v1042
    %v1044 = vmul.f32 %v1042, %v1043
    %vm1045 = vcmp.eq.f32.partialorder %v1042, inf
    %v1046 = vsel %vm1045, %v1042, %v1044
    %vm1047 = vcmp.eq.f32.partialorder %v1042, 0.0
    %v1048 = vand.u32 %v1042, 2147483648
    %v1049 = vsel %vm1047, %v1048, %v1046
    %vm1050 = vcmp.lt.s32.totalorder %v303, 32
    %v1051 = vsel %vm1050, %v1034, %v1049
    %1052 = vst.msk [vmem:[%s10] sm:$0xff] %vm995, %v1051
    // Predicated region
    $region66: #{dec_coach_net2_forward.1} parent=1 // pred_check
      _
    $region67: #{dec_coach_net2_forward.1} parent=1 // pred_check_branch
      %1054 = sbr.rel (0) target = $region69
    $region68: #{dec_coach_net2_forward.1} parent=1 // pred_region
      _
    $region69: #{dec_coach_net2_forward.1} parent=1 // pred_fallthru
      _
    // Predicated region
    $region70: #{dec_coach_net2_forward.1} parent=1 // pred_check
      _
    $region71: #{dec_coach_net2_forward.1} parent=1 // pred_check_branch
      %1056 = sbr.rel (0) target = $region73
    $region72: #{dec_coach_net2_forward.1} parent=1 // pred_region
      _
    $region73: #{dec_coach_net2_forward.1} parent=1 // pred_fallthru
      _
    %1057 = vsyncpa [#allocation3], 1
    %1058 = vsyncpa [#allocation5], 1
    %1059 = vsyncpa [#allocation8], 1
    %1060 = vsyncpa [#allocation11], 1

</llo_original>
